<compile_context>
chip_gen: v7x
topology: tpu7x:2x2x1
jax: 0.10.0
libtpu: 0.0.40
codegen_flags: <defaults>
</compile_context>

<pallas_src>
import jax
import jax.numpy as jnp
from jax.experimental import pallas as pl
from jax.experimental.pallas import tpu as pltpu

LANE = 128


def _round_up(x, m):
    return ((x + m - 1) // m) * m


def _pad_axis(a, axis, target):
    if a.shape[axis] == target:
        return a
    pad = [(0, 0)] * a.ndim
    pad[axis] = (0, target - a.shape[axis])
    return jnp.pad(a, pad)


def _fused_kernel(x_ref, m_ref, bc_ref, wl_ref, bl_ref, out_ref):
    """Forward pass for one batch chunk: two bf16 MXU matmuls + f32 softmax.

    x_ref  : (Bc, Fp)  bf16  flattened input ('same' padding folded into m_ref)
    m_ref  : (Fp, Hp)  bf16  banded (Toeplitz) weight-normed conv weight
    bc_ref : (1, Hp)   f32   conv bias, broadcast over the flatten index
    wl_ref : (Hp, Np)  bf16  linear weight (flatten-major rows)
    bl_ref : (1, Np)   f32   linear bias; padded lanes pre-set to -1e30
    out_ref: (Bc, Np)  f32   softmax probabilities (padded lanes -> 0)
    """
    # Conv1d(padding='same') + bias + ReLU as ONE matmul (K taps and Cin
    # channels are folded into the banded matrix built in the wrapper).
    h = jnp.dot(x_ref[...], m_ref[...], preferred_element_type=jnp.float32)
    h = jnp.maximum(h + bc_ref[...], 0.0)                    # (Bc, Hp) f32

    # Flatten is implicit (h is already channel-major flattened); Linear is
    # ONE bf16 matmul with f32 accumulation.
    logits = jnp.dot(h.astype(jnp.bfloat16), wl_ref[...],
                     preferred_element_type=jnp.float32)
    logits = logits + bl_ref[...]                            # padded lanes = -1e30

    # Softmax: the -1e30 bias on padded lanes makes exp() zero them out, so
    # no iota / where masking is needed.
    mx = jnp.max(logits, axis=-1, keepdims=True)
    e = jnp.exp(logits - mx)
    s = jnp.sum(e, axis=-1, keepdims=True)
    out_ref[...] = e * pl.reciprocal(s, approx=False)        # exact: rows sum to 1


def pack_conv1d_params(w_eff, b_conv, w_lin, b_lin, kernel_size, time_steps):
    """One-time, weight-only packing (call once, reuse for every forward)."""
    Cout, Cin, K = w_eff.shape
    assert K == kernel_size
    T = time_steps
    N = w_lin.shape[0]
    pad_l = (K - 1) // 2          # PyTorch padding='same', stride 1

    Fin = Cin * T                 # flattened input features (no explicit pad)
    H = Cout * T                  # flattened conv output (nn.Flatten size)
    Fp = _round_up(Fin, LANE)
    Hp = _round_up(H, LANE)
    Np = _round_up(N, LANE)

    # Banded matrix with the 'same' zero-padding folded in:
    #   M[c*T + s, o*T + t] = w_eff[o, c, k]  where s == t + k - pad_l and
    #   0 <= s < T (out-of-range taps contribute nothing == zero padding), so
    #   x.reshape(B, Cin*T) @ M == Conv1d(x) flattened channel-major.
    s_idx = jnp.arange(T)[:, None]
    t_idx = jnp.arange(T)[None, :]
    M4 = jnp.zeros((Cin, T, Cout, T), jnp.float32)
    for k in range(K):                                        # K is tiny, static
        sel = (s_idx == (t_idx + k - pad_l)).astype(jnp.float32)   # (T, T)
        M4 = M4 + w_eff[:, :, k].T[:, None, :, None] * sel[None, :, None, :]
    m_pack = _pad_axis(_pad_axis(M4.reshape(Fin, H), 0, Fp), 1, Hp)
    m_pack = m_pack.astype(jnp.bfloat16)                               # (Fp, Hp)

    bc = _pad_axis(jnp.repeat(b_conv, T).reshape(1, H), 1, Hp)         # (1, Hp) f32
    bc = bc.astype(jnp.float32)
    wl = _pad_axis(_pad_axis(jnp.transpose(w_lin), 0, Hp), 1, Np)      # (Hp, Np)
    wl = wl.astype(jnp.bfloat16)
    # Bake the output-lane mask into the bias: padded lanes -> -1e30.
    bl = jnp.full((1, Np), -1e30, jnp.float32).at[0, :N].set(
        b_lin.astype(jnp.float32))                                     # (1, Np)

    packed = jax.block_until_ready((m_pack, bc, wl, bl))   # materialize once
    dims = dict(Cin=Cin, T=T, N=N, Fin=Fin, Fp=Fp, Hp=Hp, Np=Np)
    return packed, dims


def make_conv1d_forward(w_eff, b_conv, w_lin, b_lin, kernel_size, time_steps,
                        batch_chunks=1):
    """Packs weights ONCE and returns a jitted forward fn: x (B,Cin,T) -> (B,N).

    batch_chunks=1 (whole batch in one grid step) is right for v5e/v6e and for
    small batches; only use 2 on v7x when each chunk is >= 8 rows.
    """
    (m_pack, bc, wl, bl), dims = pack_conv1d_params(
        w_eff, b_conv, w_lin, b_lin, kernel_size, time_steps)
    Cin, T, N = dims["Cin"], dims["T"], dims["N"]
    Fin, Fp, Hp, Np = dims["Fin"], dims["Fp"], dims["Hp"], dims["Np"]

    @jax.jit
    def forward(x):
        B = x.shape[0]
        assert x.shape == (B, Cin, T), x.shape
        assert B % batch_chunks == 0
        Bc = B // batch_chunks
        assert batch_chunks == 1 or Bc % 8 == 0, (
            "batch_chunks>1 requires >=8 rows per chunk (sublane tile)")

        # 'same' padding lives in m_pack, so x flattens directly; only a cheap
        # lane pad to Fp remains on the per-call path.
        xf = _pad_axis(x.reshape(B, Fin), 1, Fp).astype(jnp.bfloat16)

        out = pl.pallas_call(
            _fused_kernel,
            out_shape=jax.ShapeDtypeStruct((B, Np), jnp.float32),
            grid=(batch_chunks,),
            in_specs=[
                pl.BlockSpec((Bc, Fp), lambda b: (b, 0)),
                # Weight operands have constant index_maps -> stay VMEM-resident.
                pl.BlockSpec((Fp, Hp), lambda b: (0, 0)),
                pl.BlockSpec((1, Hp), lambda b: (0, 0)),
                pl.BlockSpec((Hp, Np), lambda b: (0, 0)),
                pl.BlockSpec((1, Np), lambda b: (0, 0)),
            ],
            out_specs=pl.BlockSpec((Bc, Np), lambda b: (b, 0)),
            compiler_params=pltpu.CompilerParams(
                dimension_semantics=("parallel",)),
        )(xf, m_pack, bc, wl, bl)
        return out[:, :N]

    return forward


def reference_forward(x, w_eff, b_conv, w_lin, b_lin, kernel_size):
    """Pure-JAX f32 reference of the PyTorch forward pass."""
    B, Cin, T = x.shape
    K = kernel_size
    Cout = w_eff.shape[0]
    pad_l = (K - 1) // 2
    pad_r = (K - 1) - pad_l
    xp = jnp.pad(x, ((0, 0), (0, 0), (pad_l, pad_r)))
    conv = jnp.zeros((B, Cout, T), jnp.float32)
    for k in range(K):
        conv = conv + jnp.einsum('oc,bct->bot', w_eff[:, :, k], xp[:, :, k:k + T])
    h = jax.nn.relu(conv + b_conv[None, :, None])
    flat = h.reshape(B, Cout * T)                 # nn.Flatten: channel-major
    logits = flat @ w_lin.T + b_lin
    return jax.nn.softmax(logits, axis=-1)


if __name__ == "__main__":
    # Module hyperparameters (consistent with __init__ defaults).
    kernel_size = 3
    time_steps = 16
    output_channels = 6
    input_size = 6
    num_outputs = 5
    batch = 2

    key = jax.random.PRNGKey(0)
    kx, kv, kg, kbc, kwl, kbl = jax.random.split(key, 6)

    # Input (PyTorch NCL): (batch, input_size, time_steps)
    x = jax.random.normal(kx, (batch, input_size, time_steps), jnp.float32)

    # weight_norm(Conv1d): w = g * v / ||v||  (norm over (in_ch, k) per out_ch)
    v = jax.random.normal(
        kv, (output_channels, input_size, kernel_size), jnp.float32) * 0.3
    g = jax.random.uniform(kg, (output_channels,), jnp.float32, 0.5, 1.5)
    v_norm = jnp.sqrt(jnp.sum(v * v, axis=(1, 2), keepdims=True))
    w_eff = g[:, None, None] * v / v_norm
    b_conv = jax.random.normal(kbc, (output_channels,), jnp.float32) * 0.1

    num_flattened = time_steps * output_channels
    w_lin = jax.random.normal(kwl, (num_outputs, num_flattened), jnp.float32) * 0.1
    b_lin = jax.random.normal(kbl, (num_outputs,), jnp.float32) * 0.1

    # Weight packing runs ONCE here; `forward` is a jitted x -> probs closure.
    forward = make_conv1d_forward(w_eff, b_conv, w_lin, b_lin, kernel_size,
                                  time_steps, batch_chunks=1)
    out = jax.block_until_ready(forward(x))

    ref = reference_forward(x, w_eff, b_conv, w_lin, b_lin, kernel_size)
    assert out.shape == (batch, num_outputs), out.shape
    # bf16 MXU inputs (f32 accumulation) => mildly relaxed elementwise tolerance.
    assert jnp.allclose(out, ref, atol=2e-2, rtol=2e-2), (out, ref)
    # Exact reciprocal in the softmax => rows sum to 1 up to f32 rounding.
    assert jnp.allclose(jnp.sum(out, axis=-1), 1.0, atol=1e-4)
    print("KERNEL_OK")
</pallas_src>

<mosaic_0001>
module attributes {stable_mosaic.version = 11 : i64} {
  func.func @_fused_kernel(%arg0: i32, %arg1: memref<2x128xbf16, #tpu.memory_space<vmem>>, %arg2: memref<128x128xbf16, #tpu.memory_space<vmem>>, %arg3: memref<1x128xf32, #tpu.memory_space<vmem>>, %arg4: memref<128x128xbf16, #tpu.memory_space<vmem>>, %arg5: memref<1x128xf32, #tpu.memory_space<vmem>>, %arg6: memref<2x128xf32, #tpu.memory_space<vmem>>) attributes {dimension_semantics = [#tpu.dimension_semantics<parallel>], iteration_bounds = array<i64: 1>, scalar_prefetch = 0 : i64, scratch_operands = 0 : i64, tpu.core_type = #tpu.core_type<tc>, window_params = [{transform_indices = @transform_0, window_bounds = array<i64: 2, 128>}, {pipeline_mode = #tpu.pipeline_mode<synchronous>, transform_indices = @transform_1, window_bounds = array<i64: 128, 128>}, {pipeline_mode = #tpu.pipeline_mode<synchronous>, transform_indices = @transform_2, window_bounds = array<i64: 1, 128>}, {pipeline_mode = #tpu.pipeline_mode<synchronous>, transform_indices = @transform_3, window_bounds = array<i64: 128, 128>}, {pipeline_mode = #tpu.pipeline_mode<synchronous>, transform_indices = @transform_4, window_bounds = array<i64: 1, 128>}, {transform_indices = @transform_5, window_bounds = array<i64: 2, 128>}]} {
    %c0 = arith.constant 0 : index
    %c0_0 = arith.constant 0 : index
    %0 = vector.load %arg1[%c0, %c0_0] : memref<2x128xbf16, #tpu.memory_space<vmem>>, vector<2x128xbf16>
    %c0_1 = arith.constant 0 : index
    %c0_2 = arith.constant 0 : index
    %1 = vector.load %arg2[%c0_1, %c0_2] : memref<128x128xbf16, #tpu.memory_space<vmem>>, vector<128x128xbf16>
    %cst = arith.constant dense<0.000000e+00> : vector<2x128xf32>
    %2 = tpu.matmul %0, %1, %cst {dimension_numbers = #tpu.dot_dimension_numbers<[1], [0], [0], [1], [0, 0, 1, 1], [], []>} : vector<2x128xbf16>, vector<128x128xbf16>, vector<2x128xf32> -> vector<2x128xf32>
    %c0_3 = arith.constant 0 : index
    %c0_4 = arith.constant 0 : index
    %3 = vector.load %arg3[%c0_3, %c0_4] : memref<1x128xf32, #tpu.memory_space<vmem>>, vector<1x128xf32>
    %4 = vector.broadcast %3 : vector<1x128xf32> to vector<2x128xf32>
    %5 = arith.addf %2, %4 : vector<2x128xf32>
    %cst_5 = arith.constant 0.000000e+00 : f32
    %6 = vector.broadcast %cst_5 : f32 to vector<2x128xf32>
    %7 = arith.maximumf %5, %6 : vector<2x128xf32>
    %8 = arith.truncf %7 : vector<2x128xf32> to vector<2x128xbf16>
    %c0_6 = arith.constant 0 : index
    %c0_7 = arith.constant 0 : index
    %9 = vector.load %arg4[%c0_6, %c0_7] : memref<128x128xbf16, #tpu.memory_space<vmem>>, vector<128x128xbf16>
    %cst_8 = arith.constant dense<0.000000e+00> : vector<2x128xf32>
    %10 = tpu.matmul %8, %9, %cst_8 {dimension_numbers = #tpu.dot_dimension_numbers<[1], [0], [0], [1], [0, 0, 1, 1], [], []>} : vector<2x128xbf16>, vector<128x128xbf16>, vector<2x128xf32> -> vector<2x128xf32>
    %c0_9 = arith.constant 0 : index
    %c0_10 = arith.constant 0 : index
    %11 = vector.load %arg5[%c0_9, %c0_10] : memref<1x128xf32, #tpu.memory_space<vmem>>, vector<1x128xf32>
    %12 = vector.broadcast %11 : vector<1x128xf32> to vector<2x128xf32>
    %13 = arith.addf %10, %12 : vector<2x128xf32>
    %cst_11 = arith.constant dense<0xFF800000> : vector<2xf32>
    %14 = vector.multi_reduction <maximumf>, %13, %cst_11 [1] : vector<2x128xf32> to vector<2xf32>
    %15 = vector.shape_cast %14 : vector<2xf32> to vector<2x1xf32>
    %16 = vector.broadcast %15 : vector<2x1xf32> to vector<2x128xf32>
    %17 = arith.subf %13, %16 : vector<2x128xf32>
    %18 = math.exp %17 : vector<2x128xf32>
    %cst_12 = arith.constant dense<0.000000e+00> : vector<2xf32>
    %19 = vector.multi_reduction <add>, %18, %cst_12 [1] : vector<2x128xf32> to vector<2xf32>
    %20 = vector.shape_cast %19 : vector<2xf32> to vector<2x1xf32>
    %21 = tpu.reciprocal %20 : vector<2x1xf32> -> vector<2x1xf32>
    %22 = vector.broadcast %21 : vector<2x1xf32> to vector<2x128xf32>
    %23 = arith.mulf %18, %22 : vector<2x128xf32>
    %c0_13 = arith.constant 0 : index
    %c0_14 = arith.constant 0 : index
    %24 = vector.load %arg6[%c0_13, %c0_14] : memref<2x128xf32, #tpu.memory_space<vmem>>, vector<2x128xf32>
    tpu.vector_store %arg6[%c0_13, %c0_14], %23 {strides = array<i32>} : memref<2x128xf32, #tpu.memory_space<vmem>>, vector<2x128xf32>,
    return
  }
  func.func @transform_0(%arg0: i32) -> (i32, i32) {
    %c0_i32 = arith.constant 0 : i32
    %c0_i32_0 = arith.constant 0 : i32
    return %arg0, %c0_i32 : i32, i32
  }
  func.func @transform_1(%arg0: i32) -> (i32, i32) {
    %c0_i32 = arith.constant 0 : i32
    %c0_i32_0 = arith.constant 0 : i32
    %c0_i32_1 = arith.constant 0 : i32
    return %c0_i32, %c0_i32_0 : i32, i32
  }
  func.func @transform_2(%arg0: i32) -> (i32, i32) {
    %c0_i32 = arith.constant 0 : i32
    %c0_i32_0 = arith.constant 0 : i32
    %c0_i32_1 = arith.constant 0 : i32
    return %c0_i32, %c0_i32_0 : i32, i32
  }
  func.func @transform_3(%arg0: i32) -> (i32, i32) {
    %c0_i32 = arith.constant 0 : i32
    %c0_i32_0 = arith.constant 0 : i32
    %c0_i32_1 = arith.constant 0 : i32
    return %c0_i32, %c0_i32_0 : i32, i32
  }
  func.func @transform_4(%arg0: i32) -> (i32, i32) {
    %c0_i32 = arith.constant 0 : i32
    %c0_i32_0 = arith.constant 0 : i32
    %c0_i32_1 = arith.constant 0 : i32
    return %c0_i32, %c0_i32_0 : i32, i32
  }
  func.func @transform_5(%arg0: i32) -> (i32, i32) {
    %c0_i32 = arith.constant 0 : i32
    %c0_i32_0 = arith.constant 0 : i32
    return %arg0, %c0_i32 : i32, i32
  }
}

</mosaic_0001>

<llo_original>
// kernel: forward.1
$region0: #{forward.1}
  #allocation0 [shape = 'u32[]', space=smem, size = 0x4, offset = 0x4, fixed_abs, tag = 'smem constant byte address 0x4 - core index']
  #allocation1 [shape = 'u32[144,128]{1,0:T(1,128)}', space=vmem, size = 0x12000, scoped, tag = 'internal scratch']
  %s0 = inlined_call_operand.vmem [shape: bf16[2,128], index: 0, kind: input, shape index: {}]
  %s1 = inlined_call_operand.hbm [shape: bf16[128,128], index: 1, kind: input, shape index: {}]
  %s2 = inlined_call_operand.vmem [shape: f32[1,128], index: 2, kind: input, shape index: {}]
  %s3 = inlined_call_operand.vmem [shape: bf16[128,128], index: 3, kind: input, shape index: {}]
  %s4 = inlined_call_operand.vmem [shape: f32[1,128], index: 4, kind: input, shape index: {}]
  %s5 = inlined_call_operand.hbm [shape: f32[2,128], index: 5, kind: output, shape index: {}]
  %s6 = sld [smem:[#allocation0]]
  $region34: #{forward.1} parent=0
    _
  %s8 = ssub.s32 1, %s6
  %s9 = scalar_select 0, %s8, %s6
  $region1: #{forward.1} parent=0
    #allocation2 [shape = 'u8[32768]{0}', space=vmem, size = 0x8000, scoped, tag = 'input window, operand 1, single buffered']
    #allocation3 [shape = 's32[1]{0}', space=sflag, size = 0x4, scoped, tag = 'scoped memory for forward.1']
    #allocation4 [shape = 's32[1]{0}', space=sflag, size = 0x4, scoped, tag = 'scoped memory for forward.1']
    #allocation5 [shape = 'u8[1024]{0}', space=vmem, size = 0x400, scoped, tag = 'output window, operand 0, single buffered']
    %10 = vsyncpa [#allocation3], 0
    %11 = vsyncpa [#allocation4], 0
    // Predicated region
    $region2: #{forward.1} parent=1 // pred_check
      _
    $region3: #{forward.1} parent=1 // pred_check_branch
      %13 = sbr.rel (0) target = $region5
    $region4: #{forward.1} parent=1 // pred_region
      _
    $region5: #{forward.1} parent=1 // pred_fallthru
      _
    // Predicated region
    $region6: #{forward.1} parent=1 // pred_check
      _
    $region7: #{forward.1} parent=1 // pred_check_branch
      %15 = sbr.rel (0) target = $region9
    $region8: #{forward.1} parent=1 // pred_region
      %s17 = ssub.s32 1024, 1024
      %18 = vsyncadd [#allocation3], %s17
      %s19 = sshll.u32 [#allocation2], 4
      %s20 = int_to_ptr.vmem [resolvable:$true] %s19
      %25 = dma.hbm_to_vmem [thread:$0]  %s1, 1024, %s20, [#allocation3], 64, 64, 4
    $region9: #{forward.1} parent=1 // pred_fallthru
      _
    // Predicated region
    $region10: #{forward.1} parent=1 // pred_check
      _
    $region11: #{forward.1} parent=1 // pred_check_branch
      %27 = sbr.rel (0) target = $region13
    $region12: #{forward.1} parent=1 // pred_region
      _
    $region13: #{forward.1} parent=1 // pred_fallthru
      _
    // Predicated region
    $region14: #{forward.1} parent=1 // pred_check
      _
    $region15: #{forward.1} parent=1 // pred_check_branch
      %29 = sbr.rel (0) target = $region17
    $region16: #{forward.1} parent=1 // pred_region
      _
    $region17: #{forward.1} parent=1 // pred_fallthru
      _
    // Predicated region
    $region18: #{forward.1} parent=1 // pred_check
      _
    $region19: #{forward.1} parent=1 // pred_check_branch
      %31 = sbr.rel (0) target = $region21
    $region20: #{forward.1} parent=1 // pred_region
      _
    $region21: #{forward.1} parent=1 // pred_fallthru
      _
    // Predicated region
    $region22: #{forward.1} parent=1 // pred_check
      _
    $region23: #{forward.1} parent=1 // pred_check_branch
      %33 = sbr.rel (0) target = $region25
    $region24: #{forward.1} parent=1 // pred_region
      %34 = dma.done [#allocation3], 1024
    $region25: #{forward.1} parent=1 // pred_fallthru
      _
    %v36 = vld [vmem:[%s0] sm:$0x1]
    %v37 = vld [vmem:[#allocation2] sm:$0xf]
    %v38 = vld [vmem:[#allocation2 + $0x4] sm:$0xf]
    %v39 = vld [vmem:[#allocation2 + $0x8] sm:$0xf]
    %v40 = vld [vmem:[#allocation2 + $0xc] sm:$0xf]
    %v41 = vld [vmem:[#allocation2 + $0x10] sm:$0xf]
    %v42 = vld [vmem:[#allocation2 + $0x14] sm:$0xf]
    %v43 = vld [vmem:[#allocation2 + $0x18] sm:$0xf]
    %v44 = vld [vmem:[#allocation2 + $0x1c] sm:$0xf]
    %v45 = vld [vmem:[#allocation2 + $0x20] sm:$0xf]
    %v46 = vld [vmem:[#allocation2 + $0x24] sm:$0xf]
    %v47 = vld [vmem:[#allocation2 + $0x28] sm:$0xf]
    %v48 = vld [vmem:[#allocation2 + $0x2c] sm:$0xf]
    %v49 = vld [vmem:[#allocation2 + $0x30] sm:$0xf]
    %v50 = vld [vmem:[#allocation2 + $0x34] sm:$0xf]
    %v51 = vld [vmem:[#allocation2 + $0x38] sm:$0xf]
    %v52 = vld [vmem:[#allocation2 + $0x3c] sm:$0xf]
    %v53 = vld [vmem:[%s2] sm:$0x1]
    %v55 = vlaneseq
    %v56 = vshrl.u32 %v55, 7
    %v57 = vsub.s32 0, %v56
    %v58 = vrot.slane %v53, %v57
    %v76 = vunpack.c.l.b16 %v37
    %v77 = vunpack.c.l.b16 %v38
    %v78 = vunpack.c.l.b16 %v39
    %v79 = vunpack.c.l.b16 %v40
    %v80 = vunpack.c.l.b16 %v41
    %v81 = vunpack.c.l.b16 %v42
    %v82 = vunpack.c.l.b16 %v43
    %v83 = vunpack.c.l.b16 %v44
    %v84 = vunpack.c.l.b16 %v45
    %v85 = vunpack.c.l.b16 %v46
    %v86 = vunpack.c.l.b16 %v47
    %v87 = vunpack.c.l.b16 %v48
    %v88 = vunpack.c.l.b16 %v49
    %v89 = vunpack.c.l.b16 %v50
    %v90 = vunpack.c.l.b16 %v51
    %v91 = vunpack.c.l.b16 %v52
    %v92 = vpack.c.b16 %v77, %v76
    %v93 = vpack.c.b16 %v79, %v78
    %v94 = vpack.c.b16 %v81, %v80
    %v95 = vpack.c.b16 %v83, %v82
    %v96 = vpack.c.b16 %v85, %v84
    %v97 = vpack.c.b16 %v87, %v86
    %v98 = vpack.c.b16 %v89, %v88
    %v99 = vpack.c.b16 %v91, %v90
    %108 = vmatprep.subr.bf16.mxu0 0
    %109 = vmatpush1.bf16.msra.mxu0 %v92
    %110 = vmatprep.subr.bf16.mxu0 0
    %111 = vmatpush1.bf16.msra.mxu0 %v93
    %112 = vmatprep.subr.bf16.mxu0 0
    %113 = vmatpush1.bf16.msra.mxu0 %v94
    %114 = vmatprep.subr.bf16.mxu0 0
    %115 = vmatpush1.bf16.msra.mxu0 %v95
    %116 = vmatprep.subr.bf16.mxu0 0
    %117 = vmatpush1.bf16.msra.mxu0 %v96
    %118 = vmatprep.subr.bf16.mxu0 0
    %119 = vmatpush1.bf16.msra.mxu0 %v97
    %120 = vmatprep.subr.bf16.mxu0 0
    %121 = vmatpush1.bf16.msra.mxu0 %v98
    %122 = vmatprep.subr.bf16.mxu0 0
    %123 = vmatpush1.bf16.msra.mxu0 %v99
    %124 = vmatprep.subr.bf16.mxu0 0
    %125 = vmatpush1.bf16.msra.mxu0 0
    %126 = vmatprep.subr.bf16.mxu0 0
    %127 = vmatpush1.bf16.msra.mxu0 0
    %128 = vmatprep.subr.bf16.mxu0 0
    %129 = vmatpush1.bf16.msra.mxu0 0
    %130 = vmatprep.subr.bf16.mxu0 0
    %131 = vmatpush1.bf16.msra.mxu0 0
    %132 = vmatprep.subr.bf16.mxu0 0
    %133 = vmatpush1.bf16.msra.mxu0 0
    %134 = vmatprep.subr.bf16.mxu0 0
    %135 = vmatpush1.bf16.msra.mxu0 0
    %136 = vmatprep.subr.bf16.mxu0 0
    %137 = vmatpush1.bf16.msra.mxu0 0
    %138 = vmatprep.subr.bf16.mxu0 0
    %139 = vmatpush1.bf16.msra.mxu0 0
    %140 = vmatprep.mubr.bf16.mxu0 0
    %141 = vmatmul.mubr.bf16.gmra.mrb[0].mxu0 %v36
    %v142 = vpop.f32.mrb[0].mxu0
    %v143 = vadd.f32 %v58, %v142
    %v144 = vpop.f32.mrb[0].mxu0
    %v145 = vpop.f32.mrb[0].mxu0
    %v146 = vpop.f32.mrb[0].mxu0
    %147 = vdwg.mxu0
    %v148 = vmax.f32 %v143, 0.0
    %v149 = vpack.c.bf16 %v148, %v148
    %v150 = vld [vmem:[%s3] sm:$0xf]
    %v151 = vld [vmem:[%s3 + $0x4] sm:$0xf]
    %v152 = vld [vmem:[%s3 + $0x8] sm:$0xf]
    %v153 = vld [vmem:[%s3 + $0xc] sm:$0xf]
    %v154 = vld [vmem:[%s3 + $0x10] sm:$0xf]
    %v155 = vld [vmem:[%s3 + $0x14] sm:$0xf]
    %v156 = vld [vmem:[%s3 + $0x18] sm:$0xf]
    %v157 = vld [vmem:[%s3 + $0x1c] sm:$0xf]
    %v158 = vld [vmem:[%s3 + $0x20] sm:$0xf]
    %v159 = vld [vmem:[%s3 + $0x24] sm:$0xf]
    %v160 = vld [vmem:[%s3 + $0x28] sm:$0xf]
    %v161 = vld [vmem:[%s3 + $0x2c] sm:$0xf]
    %v162 = vld [vmem:[%s3 + $0x30] sm:$0xf]
    %v163 = vld [vmem:[%s3 + $0x34] sm:$0xf]
    %v164 = vld [vmem:[%s3 + $0x38] sm:$0xf]
    %v165 = vld [vmem:[%s3 + $0x3c] sm:$0xf]
    %v166 = vld [vmem:[%s4] sm:$0x1]
    %v168 = vlaneseq
    %v169 = vshrl.u32 %v168, 7
    %v170 = vsub.s32 0, %v169
    %v171 = vrot.slane %v166, %v170
    %v189 = vunpack.c.l.b16 %v150
    %v190 = vunpack.c.l.b16 %v151
    %v191 = vunpack.c.l.b16 %v152
    %v192 = vunpack.c.l.b16 %v153
    %v193 = vunpack.c.l.b16 %v154
    %v194 = vunpack.c.l.b16 %v155
    %v195 = vunpack.c.l.b16 %v156
    %v196 = vunpack.c.l.b16 %v157
    %v197 = vunpack.c.l.b16 %v158
    %v198 = vunpack.c.l.b16 %v159
    %v199 = vunpack.c.l.b16 %v160
    %v200 = vunpack.c.l.b16 %v161
    %v201 = vunpack.c.l.b16 %v162
    %v202 = vunpack.c.l.b16 %v163
    %v203 = vunpack.c.l.b16 %v164
    %v204 = vunpack.c.l.b16 %v165
    %v205 = vpack.c.b16 %v190, %v189
    %v206 = vpack.c.b16 %v192, %v191
    %v207 = vpack.c.b16 %v194, %v193
    %v208 = vpack.c.b16 %v196, %v195
    %v209 = vpack.c.b16 %v198, %v197
    %v210 = vpack.c.b16 %v200, %v199
    %v211 = vpack.c.b16 %v202, %v201
    %v212 = vpack.c.b16 %v204, %v203
    %221 = vmatprep.subr.bf16.mxu0 0
    %222 = vmatpush1.bf16.msra.mxu0 %v205
    %223 = vmatprep.subr.bf16.mxu0 0
    %224 = vmatpush1.bf16.msra.mxu0 %v206
    %225 = vmatprep.subr.bf16.mxu0 0
    %226 = vmatpush1.bf16.msra.mxu0 %v207
    %227 = vmatprep.subr.bf16.mxu0 0
    %228 = vmatpush1.bf16.msra.mxu0 %v208
    %229 = vmatprep.subr.bf16.mxu0 0
    %230 = vmatpush1.bf16.msra.mxu0 %v209
    %231 = vmatprep.subr.bf16.mxu0 0
    %232 = vmatpush1.bf16.msra.mxu0 %v210
    %233 = vmatprep.subr.bf16.mxu0 0
    %234 = vmatpush1.bf16.msra.mxu0 %v211
    %235 = vmatprep.subr.bf16.mxu0 0
    %236 = vmatpush1.bf16.msra.mxu0 %v212
    %237 = vmatprep.subr.bf16.mxu0 0
    %238 = vmatpush1.bf16.msra.mxu0 0
    %239 = vmatprep.subr.bf16.mxu0 0
    %240 = vmatpush1.bf16.msra.mxu0 0
    %241 = vmatprep.subr.bf16.mxu0 0
    %242 = vmatpush1.bf16.msra.mxu0 0
    %243 = vmatprep.subr.bf16.mxu0 0
    %244 = vmatpush1.bf16.msra.mxu0 0
    %245 = vmatprep.subr.bf16.mxu0 0
    %246 = vmatpush1.bf16.msra.mxu0 0
    %247 = vmatprep.subr.bf16.mxu0 0
    %248 = vmatpush1.bf16.msra.mxu0 0
    %249 = vmatprep.subr.bf16.mxu0 0
    %250 = vmatpush1.bf16.msra.mxu0 0
    %251 = vmatprep.subr.bf16.mxu0 0
    %252 = vmatpush1.bf16.msra.mxu0 0
    %253 = vmatprep.mubr.bf16.mxu0 0
    %254 = vmatmul.mubr.bf16.gmra.mrb[0].mxu0 %v149
    %v255 = vpop.f32.mrb[0].mxu0
    %v256 = vadd.f32 %v171, %v255
    %v257 = vpop.f32.mrb[0].mxu0
    %v258 = vpop.f32.mrb[0].mxu0
    %v259 = vpop.f32.mrb[0].mxu0
    %260 = vdwg.mxu0
    %vm261 = vcmask 1041408
    %v262 = vsel %vm261, %v256, -inf
    %263 = vmax.xlane.f32.xlu0 %v262
    %v264 = vpop.xlane.xlu0 %263
    %v265 = vsub.f32 %v256, %v264
    %v266 = vmul.f32 %v265, 1.442695
    %v267 = vpow.pop %v266
    %v268 = vsel %vm261, %v267, 0.0
    %269 = vadd.xlane.f32.xlu0 %v268
    %v270 = vpop.xlane.xlu0 %269
    %v271 = vrcp.pop %v270
    %v272 = vmul.f32 %v267, %v271
    %273 = vst [vmem:[#allocation5] sm:$0x3] %v272
    // Predicated region
    $region26: #{forward.1} parent=1 // pred_check
      _
    $region27: #{forward.1} parent=1 // pred_check_branch
      %275 = sbr.rel (0) target = $region29
    $region28: #{forward.1} parent=1 // pred_region
      %s277 = ssub.s32 32, 32
      %278 = vsyncadd [#allocation4], %s277
      %s280 = sshll.u32 [#allocation5], 4
      %s281 = int_to_ptr.vmem [resolvable:$true] %s280
      %283 = dma.vmem_to_hbm [thread:$0]  %s281, 32, %s5, [#allocation4]
    $region29: #{forward.1} parent=1 // pred_fallthru
      _
    // Predicated region
    $region30: #{forward.1} parent=1 // pred_check
      _
    $region31: #{forward.1} parent=1 // pred_check_branch
      %285 = sbr.rel (0) target = $region33
    $region32: #{forward.1} parent=1 // pred_region
      %286 = dma.done [#allocation4], 32
    $region33: #{forward.1} parent=1 // pred_fallthru
      _
    %287 = vsyncpa [#allocation3], 1
    %288 = vsyncpa [#allocation4], 1

</llo_original>
